<compile_context>
chip_gen: v7x
topology: tpu7x:2x2x1
jax: 0.10.0
libtpu: 0.0.40
codegen_flags: <defaults>
</compile_context>

<pallas_src>
import functools

import jax
import jax.numpy as jnp
from jax.experimental import pallas as pl
from jax.experimental.pallas import tpu as pltpu


def rnn_kernel(x_ref, wih_ref, whh_ref, b_ref, wfc_ref, bfc_ref, out_ref, proj_ref,
               *, t_steps, b_tile):
    # x_ref:    (T*b_tile, D)  rows ordered (t, b-within-tile) for this batch tile
    # wih_ref:  (D, H)   whh_ref: (H, H)   b_ref: (1, H)
    # wfc_ref:  (H, O)   bfc_ref: (1, O)   out_ref: (b_tile, O)
    # proj_ref: (T*b_tile, H) VMEM scratch
    wih = wih_ref[...]
    b_rnn = b_ref[...]
    # One-time cast: the recurrent matmul runs as a single bf16 MXU pass per step.
    whh_bf16 = whh_ref[...].astype(jnp.bfloat16)
    hidden = whh_bf16.shape[0]

    # Hoisted input projection for all timesteps of this tile, one MXU matmul.
    # proj[t*b_tile + b, :] = x[b, t, :] @ W_ih^T + (b_ih + b_hh)
    proj_ref[...] = (
        jnp.dot(x_ref[...], wih, preferred_element_type=jnp.float32) + b_rnn
    )

    h0 = jnp.zeros((b_tile, hidden), jnp.float32)

    def step(row_start, h):
        x_t = proj_ref[pl.ds(row_start, b_tile), :]          # (b_tile, H)
        # bf16 lhs/rhs, f32 accumulate: single MXU pass on the serial chain.
        return jnp.tanh(
            jnp.dot(h.astype(jnp.bfloat16), whh_bf16,
                    preferred_element_type=jnp.float32) + x_t
        )

    if t_steps <= 32:
        # Short sequences: fully unrolled, static sublane-aligned slices, h in vregs.
        h = h0
        for t in range(t_steps):
            h = step(t * b_tile, h)
    else:
        # Long sequences: bounded code size / vreg pressure.
        def body(t, h):
            return step(pl.multiple_of(t * b_tile, b_tile), h)
        h = jax.lax.fori_loop(0, t_steps, body, h0, unroll=8)

    # fc1 applied to the last hidden state (== fc1(rnn_out)[:, -1, :]); kept in f32.
    out_ref[...] = (
        jnp.dot(h, wfc_ref[...], preferred_element_type=jnp.float32) + bfc_ref[...]
    ).astype(out_ref.dtype)


def rnn_forward(x, w_ih, w_hh, b_ih, b_hh, w_fc, b_fc):
    """x: (B, T, D) float32. Returns (B, output_size) float32."""
    B, T, D = x.shape
    H = w_ih.shape[0]
    O = w_fc.shape[0]
    assert T >= 1, "empty sequence not supported"

    B_TILE = 8                                   # one sublane tile of batch rows
    Bp = ((B + B_TILE - 1) // B_TILE) * B_TILE
    n_tiles = Bp // B_TILE

    # Wrapper glue (tiny at these shapes, fuses in XLA): time-major, pad batch,
    # regroup rows as (batch_tile, t, b-within-tile) so each grid step's x block is
    # contiguous and per-step slices are sublane-aligned.
    x_tm = jnp.transpose(x, (1, 0, 2))                           # (T, B, D)
    x_tm = jnp.pad(x_tm, ((0, 0), (0, Bp - B), (0, 0)))          # (T, Bp, D)
    x_tiles = x_tm.reshape(T, n_tiles, B_TILE, D).transpose(1, 0, 2, 3)
    x_tiles = x_tiles.reshape(n_tiles, T * B_TILE, D)            # (n_tiles, T*8, D)

    wih_t = w_ih.T                                               # (D, H)
    whh_t = w_hh.T                                               # (H, H)
    wfc_t = w_fc.T                                               # (H, O)
    b_rnn = (b_ih + b_hh).reshape(1, H)                          # (1, H)
    b_out = b_fc.reshape(1, O)                                   # (1, O)

    kernel = functools.partial(rnn_kernel, t_steps=T, b_tile=B_TILE)

    out_p = pl.pallas_call(
        kernel,
        out_shape=jax.ShapeDtypeStruct((Bp, O), jnp.float32),
        grid=(n_tiles,),
        in_specs=[
            # Per-tile x block; weights/biases replicated across the grid.
            pl.BlockSpec((None, T * B_TILE, D), lambda i: (i, 0, 0)),
            pl.BlockSpec((D, H), lambda i: (0, 0)),
            pl.BlockSpec((H, H), lambda i: (0, 0)),
            pl.BlockSpec((1, H), lambda i: (0, 0)),
            pl.BlockSpec((H, O), lambda i: (0, 0)),
            pl.BlockSpec((1, O), lambda i: (0, 0)),
        ],
        out_specs=pl.BlockSpec((B_TILE, O), lambda i: (i, 0)),
        scratch_shapes=[pltpu.VMEM((T * B_TILE, H), jnp.float32)],
        compiler_params=pltpu.CompilerParams(
            dimension_semantics=("parallel",)),
    )(x_tiles, wih_t, whh_t, b_rnn, wfc_t, b_out)

    return out_p[:B]


def rnn_forward_ref(x, w_ih, w_hh, b_ih, b_hh, w_fc, b_fc):
    """Pure-JAX f32 reference matching nn.RNN(batch_first=True) + Linear, [:, -1, :]."""
    B, T, D = x.shape
    H = w_ih.shape[0]

    def step(h, x_t):
        h = jnp.tanh(x_t @ w_ih.T + b_ih + h @ w_hh.T + b_hh)
        return h, h

    h0 = jnp.zeros((B, H), jnp.float32)
    h_last, _ = jax.lax.scan(step, h0, jnp.transpose(x, (1, 0, 2)))
    return h_last @ w_fc.T + b_fc


if __name__ == "__main__":
    # Small shapes consistent with the module: input_size=4, hidden=32, output=16.
    B, T, D, H, O = 2, 8, 4, 32, 16

    key = jax.random.PRNGKey(0)
    ks = jax.random.split(key, 7)
    bound = 1.0 / jnp.sqrt(H)  # PyTorch default uniform(-1/sqrt(H), 1/sqrt(H))

    x = jax.random.normal(ks[0], (B, T, D), dtype=jnp.float32)
    w_ih = jax.random.uniform(ks[1], (H, D), jnp.float32, -bound, bound)
    w_hh = jax.random.uniform(ks[2], (H, H), jnp.float32, -bound, bound)
    b_ih = jax.random.uniform(ks[3], (H,), jnp.float32, -bound, bound)
    b_hh = jax.random.uniform(ks[4], (H,), jnp.float32, -bound, bound)
    w_fc = jax.random.uniform(ks[5], (O, H), jnp.float32, -bound, bound)
    b_fc = jax.random.uniform(ks[6], (O,), jnp.float32, -bound, bound)

    out = rnn_forward(x, w_ih, w_hh, b_ih, b_hh, w_fc, b_fc)
    jax.block_until_ready(out)

    ref = rnn_forward_ref(x, w_ih, w_hh, b_ih, b_hh, w_fc, b_fc)
    assert out.shape == (B, O)
    # Recurrent matmul runs in bf16 (f32 accumulate), so compare at bf16-level tol.
    assert jnp.allclose(out, ref, atol=2e-2, rtol=2e-2)

    print("KERNEL_OK")
</pallas_src>

<mosaic_0001>
module attributes {stable_mosaic.version = 11 : i64} {
  func.func @rnn_kernel(%arg0: i32, %arg1: memref<1x64x4xf32, #tpu.memory_space<vmem>>, %arg2: memref<4x32xf32, #tpu.memory_space<vmem>>, %arg3: memref<32x32xf32, #tpu.memory_space<vmem>>, %arg4: memref<1x32xf32, #tpu.memory_space<vmem>>, %arg5: memref<32x16xf32, #tpu.memory_space<vmem>>, %arg6: memref<1x16xf32, #tpu.memory_space<vmem>>, %arg7: memref<8x16xf32, #tpu.memory_space<vmem>>, %arg8: memref<64x32xf32, #tpu.memory_space<vmem>>) attributes {dimension_semantics = [#tpu.dimension_semantics<parallel>], iteration_bounds = array<i64: 1>, scalar_prefetch = 0 : i64, scratch_operands = 1 : i64, tpu.core_type = #tpu.core_type<tc>, window_params = [{transform_indices = @transform_0, window_bounds = array<i64: 1, 64, 4>}, {pipeline_mode = #tpu.pipeline_mode<synchronous>, transform_indices = @transform_1, window_bounds = array<i64: 4, 32>}, {pipeline_mode = #tpu.pipeline_mode<synchronous>, transform_indices = @transform_2, window_bounds = array<i64: 32, 32>}, {pipeline_mode = #tpu.pipeline_mode<synchronous>, transform_indices = @transform_3, window_bounds = array<i64: 1, 32>}, {pipeline_mode = #tpu.pipeline_mode<synchronous>, transform_indices = @transform_4, window_bounds = array<i64: 32, 16>}, {pipeline_mode = #tpu.pipeline_mode<synchronous>, transform_indices = @transform_5, window_bounds = array<i64: 1, 16>}, {transform_indices = @transform_6, window_bounds = array<i64: 8, 16>}]} {
    %c0 = arith.constant 0 : index
    %c0_0 = arith.constant 0 : index
    %0 = vector.load %arg2[%c0, %c0_0] : memref<4x32xf32, #tpu.memory_space<vmem>>, vector<4x32xf32>
    %c0_1 = arith.constant 0 : index
    %c0_2 = arith.constant 0 : index
    %1 = vector.load %arg4[%c0_1, %c0_2] : memref<1x32xf32, #tpu.memory_space<vmem>>, vector<1x32xf32>
    %c0_3 = arith.constant 0 : index
    %c0_4 = arith.constant 0 : index
    %2 = vector.load %arg3[%c0_3, %c0_4] : memref<32x32xf32, #tpu.memory_space<vmem>>, vector<32x32xf32>
    %3 = arith.truncf %2 : vector<32x32xf32> to vector<32x32xbf16>
    %c0_5 = arith.constant 0 : index
    %c0_6 = arith.constant 0 : index
    %c0_7 = arith.constant 0 : index
    %4 = vector.load %arg1[%c0_5, %c0_6, %c0_7] : memref<1x64x4xf32, #tpu.memory_space<vmem>>, vector<1x64x4xf32>
    %5 = vector.shape_cast %4 : vector<1x64x4xf32> to vector<64x4xf32>
    %cst = arith.constant dense<0.000000e+00> : vector<64x32xf32>
    %6 = tpu.matmul %5, %0, %cst {dimension_numbers = #tpu.dot_dimension_numbers<[1], [0], [0], [1], [0, 0, 1, 1], [], []>} : vector<64x4xf32>, vector<4x32xf32>, vector<64x32xf32> -> vector<64x32xf32>
    %7 = vector.broadcast %1 : vector<1x32xf32> to vector<64x32xf32>
    %8 = arith.addf %6, %7 : vector<64x32xf32>
    %c0_8 = arith.constant 0 : index
    %c0_9 = arith.constant 0 : index
    %9 = vector.load %arg8[%c0_8, %c0_9] : memref<64x32xf32, #tpu.memory_space<vmem>>, vector<64x32xf32>
    tpu.vector_store %arg8[%c0_8, %c0_9], %8 {strides = array<i32>} : memref<64x32xf32, #tpu.memory_space<vmem>>, vector<64x32xf32>,
    %cst_10 = arith.constant 0.000000e+00 : f32
    %10 = vector.broadcast %cst_10 : f32 to vector<8x32xf32>
    %c0_11 = arith.constant 0 : index
    %c0_12 = arith.constant 0 : index
    %11 = vector.load %arg8[%c0_11, %c0_12] : memref<64x32xf32, #tpu.memory_space<vmem>>, vector<8x32xf32>
    %12 = arith.truncf %10 : vector<8x32xf32> to vector<8x32xbf16>
    %cst_13 = arith.constant dense<0.000000e+00> : vector<8x32xf32>
    %13 = tpu.matmul %12, %3, %cst_13 {dimension_numbers = #tpu.dot_dimension_numbers<[1], [0], [0], [1], [0, 0, 1, 1], [], []>} : vector<8x32xbf16>, vector<32x32xbf16>, vector<8x32xf32> -> vector<8x32xf32>
    %14 = arith.addf %13, %11 : vector<8x32xf32>
    %15 = math.tanh %14 : vector<8x32xf32>
    %c8 = arith.constant 8 : index
    %c0_14 = arith.constant 0 : index
    %16 = vector.load %arg8[%c8, %c0_14] : memref<64x32xf32, #tpu.memory_space<vmem>>, vector<8x32xf32>
    %17 = arith.truncf %15 : vector<8x32xf32> to vector<8x32xbf16>
    %cst_15 = arith.constant dense<0.000000e+00> : vector<8x32xf32>
    %18 = tpu.matmul %17, %3, %cst_15 {dimension_numbers = #tpu.dot_dimension_numbers<[1], [0], [0], [1], [0, 0, 1, 1], [], []>} : vector<8x32xbf16>, vector<32x32xbf16>, vector<8x32xf32> -> vector<8x32xf32>
    %19 = arith.addf %18, %16 : vector<8x32xf32>
    %20 = math.tanh %19 : vector<8x32xf32>
    %c16 = arith.constant 16 : index
    %c0_16 = arith.constant 0 : index
    %21 = vector.load %arg8[%c16, %c0_16] : memref<64x32xf32, #tpu.memory_space<vmem>>, vector<8x32xf32>
    %22 = arith.truncf %20 : vector<8x32xf32> to vector<8x32xbf16>
    %cst_17 = arith.constant dense<0.000000e+00> : vector<8x32xf32>
    %23 = tpu.matmul %22, %3, %cst_17 {dimension_numbers = #tpu.dot_dimension_numbers<[1], [0], [0], [1], [0, 0, 1, 1], [], []>} : vector<8x32xbf16>, vector<32x32xbf16>, vector<8x32xf32> -> vector<8x32xf32>
    %24 = arith.addf %23, %21 : vector<8x32xf32>
    %25 = math.tanh %24 : vector<8x32xf32>
    %c24 = arith.constant 24 : index
    %c0_18 = arith.constant 0 : index
    %26 = vector.load %arg8[%c24, %c0_18] : memref<64x32xf32, #tpu.memory_space<vmem>>, vector<8x32xf32>
    %27 = arith.truncf %25 : vector<8x32xf32> to vector<8x32xbf16>
    %cst_19 = arith.constant dense<0.000000e+00> : vector<8x32xf32>
    %28 = tpu.matmul %27, %3, %cst_19 {dimension_numbers = #tpu.dot_dimension_numbers<[1], [0], [0], [1], [0, 0, 1, 1], [], []>} : vector<8x32xbf16>, vector<32x32xbf16>, vector<8x32xf32> -> vector<8x32xf32>
    %29 = arith.addf %28, %26 : vector<8x32xf32>
    %30 = math.tanh %29 : vector<8x32xf32>
    %c32 = arith.constant 32 : index
    %c0_20 = arith.constant 0 : index
    %31 = vector.load %arg8[%c32, %c0_20] : memref<64x32xf32, #tpu.memory_space<vmem>>, vector<8x32xf32>
    %32 = arith.truncf %30 : vector<8x32xf32> to vector<8x32xbf16>
    %cst_21 = arith.constant dense<0.000000e+00> : vector<8x32xf32>
    %33 = tpu.matmul %32, %3, %cst_21 {dimension_numbers = #tpu.dot_dimension_numbers<[1], [0], [0], [1], [0, 0, 1, 1], [], []>} : vector<8x32xbf16>, vector<32x32xbf16>, vector<8x32xf32> -> vector<8x32xf32>
    %34 = arith.addf %33, %31 : vector<8x32xf32>
    %35 = math.tanh %34 : vector<8x32xf32>
    %c40 = arith.constant 40 : index
    %c0_22 = arith.constant 0 : index
    %36 = vector.load %arg8[%c40, %c0_22] : memref<64x32xf32, #tpu.memory_space<vmem>>, vector<8x32xf32>
    %37 = arith.truncf %35 : vector<8x32xf32> to vector<8x32xbf16>
    %cst_23 = arith.constant dense<0.000000e+00> : vector<8x32xf32>
    %38 = tpu.matmul %37, %3, %cst_23 {dimension_numbers = #tpu.dot_dimension_numbers<[1], [0], [0], [1], [0, 0, 1, 1], [], []>} : vector<8x32xbf16>, vector<32x32xbf16>, vector<8x32xf32> -> vector<8x32xf32>
    %39 = arith.addf %38, %36 : vector<8x32xf32>
    %40 = math.tanh %39 : vector<8x32xf32>
    %c48 = arith.constant 48 : index
    %c0_24 = arith.constant 0 : index
    %41 = vector.load %arg8[%c48, %c0_24] : memref<64x32xf32, #tpu.memory_space<vmem>>, vector<8x32xf32>
    %42 = arith.truncf %40 : vector<8x32xf32> to vector<8x32xbf16>
    %cst_25 = arith.constant dense<0.000000e+00> : vector<8x32xf32>
    %43 = tpu.matmul %42, %3, %cst_25 {dimension_numbers = #tpu.dot_dimension_numbers<[1], [0], [0], [1], [0, 0, 1, 1], [], []>} : vector<8x32xbf16>, vector<32x32xbf16>, vector<8x32xf32> -> vector<8x32xf32>
    %44 = arith.addf %43, %41 : vector<8x32xf32>
    %45 = math.tanh %44 : vector<8x32xf32>
    %c56 = arith.constant 56 : index
    %c0_26 = arith.constant 0 : index
    %46 = vector.load %arg8[%c56, %c0_26] : memref<64x32xf32, #tpu.memory_space<vmem>>, vector<8x32xf32>
    %47 = arith.truncf %45 : vector<8x32xf32> to vector<8x32xbf16>
    %cst_27 = arith.constant dense<0.000000e+00> : vector<8x32xf32>
    %48 = tpu.matmul %47, %3, %cst_27 {dimension_numbers = #tpu.dot_dimension_numbers<[1], [0], [0], [1], [0, 0, 1, 1], [], []>} : vector<8x32xbf16>, vector<32x32xbf16>, vector<8x32xf32> -> vector<8x32xf32>
    %49 = arith.addf %48, %46 : vector<8x32xf32>
    %50 = math.tanh %49 : vector<8x32xf32>
    %c0_28 = arith.constant 0 : index
    %c0_29 = arith.constant 0 : index
    %51 = vector.load %arg5[%c0_28, %c0_29] : memref<32x16xf32, #tpu.memory_space<vmem>>, vector<32x16xf32>
    %cst_30 = arith.constant dense<0.000000e+00> : vector<8x16xf32>
    %52 = tpu.matmul %50, %51, %cst_30 {dimension_numbers = #tpu.dot_dimension_numbers<[1], [0], [0], [1], [0, 0, 1, 1], [], []>} : vector<8x32xf32>, vector<32x16xf32>, vector<8x16xf32> -> vector<8x16xf32>
    %c0_31 = arith.constant 0 : index
    %c0_32 = arith.constant 0 : index
    %53 = vector.load %arg6[%c0_31, %c0_32] : memref<1x16xf32, #tpu.memory_space<vmem>>, vector<1x16xf32>
    %54 = vector.broadcast %53 : vector<1x16xf32> to vector<8x16xf32>
    %55 = arith.addf %52, %54 : vector<8x16xf32>
    %c0_33 = arith.constant 0 : index
    %c0_34 = arith.constant 0 : index
    %56 = vector.load %arg7[%c0_33, %c0_34] : memref<8x16xf32, #tpu.memory_space<vmem>>, vector<8x16xf32>
    tpu.vector_store %arg7[%c0_33, %c0_34], %55 {strides = array<i32>} : memref<8x16xf32, #tpu.memory_space<vmem>>, vector<8x16xf32>,
    return
  }
  func.func @transform_0(%arg0: i32) -> (i32, i32, i32) {
    %c0_i32 = arith.constant 0 : i32
    %c0_i32_0 = arith.constant 0 : i32
    %c0_i32_1 = arith.constant 0 : i32
    return %arg0, %c0_i32, %c0_i32_0 : i32, i32, i32
  }
  func.func @transform_1(%arg0: i32) -> (i32, i32) {
    %c0_i32 = arith.constant 0 : i32
    %c0_i32_0 = arith.constant 0 : i32
    %c0_i32_1 = arith.constant 0 : i32
    return %c0_i32, %c0_i32_0 : i32, i32
  }
  func.func @transform_2(%arg0: i32) -> (i32, i32) {
    %c0_i32 = arith.constant 0 : i32
    %c0_i32_0 = arith.constant 0 : i32
    %c0_i32_1 = arith.constant 0 : i32
    return %c0_i32, %c0_i32_0 : i32, i32
  }
  func.func @transform_3(%arg0: i32) -> (i32, i32) {
    %c0_i32 = arith.constant 0 : i32
    %c0_i32_0 = arith.constant 0 : i32
    %c0_i32_1 = arith.constant 0 : i32
    return %c0_i32, %c0_i32_0 : i32, i32
  }
  func.func @transform_4(%arg0: i32) -> (i32, i32) {
    %c0_i32 = arith.constant 0 : i32
    %c0_i32_0 = arith.constant 0 : i32
    %c0_i32_1 = arith.constant 0 : i32
    return %c0_i32, %c0_i32_0 : i32, i32
  }
  func.func @transform_5(%arg0: i32) -> (i32, i32) {
    %c0_i32 = arith.constant 0 : i32
    %c0_i32_0 = arith.constant 0 : i32
    %c0_i32_1 = arith.constant 0 : i32
    return %c0_i32, %c0_i32_0 : i32, i32
  }
  func.func @transform_6(%arg0: i32) -> (i32, i32) {
    %c0_i32 = arith.constant 0 : i32
    %c0_i32_0 = arith.constant 0 : i32
    return %arg0, %c0_i32 : i32, i32
  }
}

</mosaic_0001>

<llo_original>
// kernel: tpu_custom_call.1
$region0: #{tpu_custom_call.1}
  #allocation0 [shape = 'u32[]', space=smem, size = 0x4, offset = 0x4, fixed_abs, tag = 'smem constant byte address 0x4 - core index']
  #allocation1 [shape = 'u32[144,128]{1,0:T(1,128)}', space=vmem, size = 0x12000, scoped, tag = 'internal scratch']
  #allocation2 [shape = 'f32[64,32]{1,0:T(8,128)}', space=vmem, size = 0x8000, scoped, tag = 'scratch operand']
  %s0 = inlined_call_operand.vmem [shape: f32[1,64,4], index: 0, kind: input, shape index: {}]
  %s1 = inlined_call_operand.vmem [shape: f32[4,32], index: 1, kind: input, shape index: {}]
  %s2 = inlined_call_operand.vmem [shape: f32[32,32], index: 2, kind: input, shape index: {}]
  %s3 = inlined_call_operand.vmem [shape: f32[1,32], index: 3, kind: input, shape index: {}]
  %s4 = inlined_call_operand.vmem [shape: f32[32,16], index: 4, kind: input, shape index: {}]
  %s5 = inlined_call_operand.vmem [shape: f32[1,16], index: 5, kind: input, shape index: {}]
  %s6 = inlined_call_operand.hbm [shape: f32[8,16], index: 6, kind: output, shape index: {}]
  %s7 = sld [smem:[#allocation0]]
  $region34: #{tpu_custom_call.1} parent=0
    _
  %s9 = ssub.s32 1, %s7
  %s10 = scalar_select 0, %s9, %s7
  $region1: #{tpu_custom_call.1} parent=0
    #allocation3 [shape = 'u8[4096]{0}', space=vmem, size = 0x1000, scoped, tag = 'output window, operand 0, single buffered']
    #allocation4 [shape = 's32[1]{0}', space=sflag, size = 0x4, scoped, tag = 'scoped memory for tpu_custom_call.1']
    %11 = vsyncpa [#allocation4], 0
    // Predicated region
    $region2: #{tpu_custom_call.1} parent=1 // pred_check
      _
    $region3: #{tpu_custom_call.1} parent=1 // pred_check_branch
      %13 = sbr.rel (0) target = $region5
    $region4: #{tpu_custom_call.1} parent=1 // pred_region
      _
    $region5: #{tpu_custom_call.1} parent=1 // pred_fallthru
      _
    // Predicated region
    $region6: #{tpu_custom_call.1} parent=1 // pred_check
      _
    $region7: #{tpu_custom_call.1} parent=1 // pred_check_branch
      %15 = sbr.rel (0) target = $region9
    $region8: #{tpu_custom_call.1} parent=1 // pred_region
      _
    $region9: #{tpu_custom_call.1} parent=1 // pred_fallthru
      _
    // Predicated region
    $region10: #{tpu_custom_call.1} parent=1 // pred_check
      _
    $region11: #{tpu_custom_call.1} parent=1 // pred_check_branch
      %17 = sbr.rel (0) target = $region13
    $region12: #{tpu_custom_call.1} parent=1 // pred_region
      _
    $region13: #{tpu_custom_call.1} parent=1 // pred_fallthru
      _
    // Predicated region
    $region14: #{tpu_custom_call.1} parent=1 // pred_check
      _
    $region15: #{tpu_custom_call.1} parent=1 // pred_check_branch
      %19 = sbr.rel (0) target = $region17
    $region16: #{tpu_custom_call.1} parent=1 // pred_region
      _
    $region17: #{tpu_custom_call.1} parent=1 // pred_fallthru
      _
    // Predicated region
    $region18: #{tpu_custom_call.1} parent=1 // pred_check
      _
    $region19: #{tpu_custom_call.1} parent=1 // pred_check_branch
      %21 = sbr.rel (0) target = $region21
    $region20: #{tpu_custom_call.1} parent=1 // pred_region
      _
    $region21: #{tpu_custom_call.1} parent=1 // pred_fallthru
      _
    // Predicated region
    $region22: #{tpu_custom_call.1} parent=1 // pred_check
      _
    $region23: #{tpu_custom_call.1} parent=1 // pred_check_branch
      %23 = sbr.rel (0) target = $region25
    $region24: #{tpu_custom_call.1} parent=1 // pred_region
      _
    $region25: #{tpu_custom_call.1} parent=1 // pred_fallthru
      _
    %v25 = vld [vmem:[%s1] sm:$0xf]
    %v26 = vld [vmem:[%s3] sm:$0x1]
    %v27 = vld [vmem:[%s2] sm:$0xff]
    %v28 = vld [vmem:[%s2 + $0x8] sm:$0xff]
    %v29 = vld [vmem:[%s2 + $0x10] sm:$0xff]
    %v30 = vld [vmem:[%s2 + $0x18] sm:$0xff]
    %v31 = vpack.c.bf16 %v28, %v27
    %v32 = vpack.c.bf16 %v30, %v29
    %v33 = vld [vmem:[%s0] sm:$0xff]
    %v34 = vld [vmem:[%s0 + $0x8] sm:$0xff]
    %v35 = vld [vmem:[%s0 + $0x10] sm:$0xff]
    %v36 = vld [vmem:[%s0 + $0x18] sm:$0xff]
    %v37 = vld [vmem:[%s0 + $0x20] sm:$0xff]
    %v38 = vld [vmem:[%s0 + $0x28] sm:$0xff]
    %v39 = vld [vmem:[%s0 + $0x30] sm:$0xff]
    %v40 = vld [vmem:[%s0 + $0x38] sm:$0xff]
    %v42 = vlaneseq
    %v43 = vshrl.u32 %v42, 7
    %v44 = vsub.s32 0, %v43
    %v45 = vrot.slane %v26, %v44
    %vm47 = vcmask 31744
    %v49 = vsel %vm47, %v33, 0
    %v52 = vsel %vm47, %v34, 0
    %v55 = vsel %vm47, %v35, 0
    %v58 = vsel %vm47, %v36, 0
    %v61 = vsel %vm47, %v37, 0
    %v64 = vsel %vm47, %v38, 0
    %v67 = vsel %vm47, %v39, 0
    %v70 = vsel %vm47, %v40, 0
    %vm72 = vcmask 1043456
    %v74 = vsel %vm72, %v25, 0
    %76 = vmatprep.subr.mxu0 0.0
    %77 = vmatpush1.msra.mxu0 %v74
    %78 = vmatprep.subr.mxu0 0.0
    %79 = vmatpush1.msra.mxu0 0.0
    %80 = vmatprep.subr.mxu0 0.0
    %81 = vmatpush1.msra.mxu0 0.0
    %82 = vmatprep.subr.mxu0 0.0
    %83 = vmatpush1.msra.mxu0 0.0
    %84 = vmatprep.subr.mxu0 0.0
    %85 = vmatpush1.msra.mxu0 0.0
    %86 = vmatprep.subr.mxu0 0.0
    %87 = vmatpush1.msra.mxu0 0.0
    %88 = vmatprep.subr.mxu0 0.0
    %89 = vmatpush1.msra.mxu0 0.0
    %90 = vmatprep.subr.mxu0 0.0
    %91 = vmatpush1.msra.mxu0 0.0
    %92 = vmatprep.subr.mxu0 0.0
    %93 = vmatpush1.msra.mxu0 0.0
    %94 = vmatprep.subr.mxu0 0.0
    %95 = vmatpush1.msra.mxu0 0.0
    %96 = vmatprep.subr.mxu0 0.0
    %97 = vmatpush1.msra.mxu0 0.0
    %98 = vmatprep.subr.mxu0 0.0
    %99 = vmatpush1.msra.mxu0 0.0
    %100 = vmatprep.subr.mxu0 0.0
    %101 = vmatpush1.msra.mxu0 0.0
    %102 = vmatprep.subr.mxu0 0.0
    %103 = vmatpush1.msra.mxu0 0.0
    %104 = vmatprep.subr.mxu0 0.0
    %105 = vmatpush1.msra.mxu0 0.0
    %106 = vmatprep.subr.mxu0 0.0
    %107 = vmatpush1.msra.mxu0 0.0
    %108 = vmatprep.subr.mxu0 0.0
    %109 = vmatpush1.msra.mxu0 0.0
    %110 = vmatprep.subr.mxu0 0.0
    %111 = vmatpush1.msra.mxu0 0.0
    %112 = vmatprep.subr.mxu0 0.0
    %113 = vmatpush1.msra.mxu0 0.0
    %114 = vmatprep.subr.mxu0 0.0
    %115 = vmatpush1.msra.mxu0 0.0
    %116 = vmatprep.subr.mxu0 0.0
    %117 = vmatpush1.msra.mxu0 0.0
    %118 = vmatprep.subr.mxu0 0.0
    %119 = vmatpush1.msra.mxu0 0.0
    %120 = vmatprep.subr.mxu0 0.0
    %121 = vmatpush1.msra.mxu0 0.0
    %122 = vmatprep.subr.mxu0 0.0
    %123 = vmatpush1.msra.mxu0 0.0
    %124 = vmatprep.subr.mxu0 0.0
    %125 = vmatpush1.msra.mxu0 0.0
    %126 = vmatprep.subr.mxu0 0.0
    %127 = vmatpush1.msra.mxu0 0.0
    %128 = vmatprep.subr.mxu0 0.0
    %129 = vmatpush1.msra.mxu0 0.0
    %130 = vmatprep.subr.mxu0 0.0
    %131 = vmatpush1.msra.mxu0 0.0
    %132 = vmatprep.subr.mxu0 0.0
    %133 = vmatpush1.msra.mxu0 0.0
    %134 = vmatprep.subr.mxu0 0.0
    %135 = vmatpush1.msra.mxu0 0.0
    %136 = vmatprep.subr.mxu0 0.0
    %137 = vmatpush1.msra.mxu0 0.0
    %138 = vmatprep.subr.mxu0 0.0
    %139 = vmatpush1.msra.mxu0 0.0
    %140 = vmatprep.mubr.f32.mxu0 0.0
    %141 = vmatmul.mubr.f32.gmra.mrb[0].mxu0 %v49
    %v142 = vpop.f32.mrb[0].mxu0
    %v143 = vadd.f32 %v45, %v142
    %v144 = vpop.f32.mrb[0].mxu0
    %145 = vmatprep.mubr.f32.mxu0 0.0
    %146 = vmatmul.mubr.f32.gmra.mrb[0].mxu0 %v52
    %v147 = vpop.f32.mrb[0].mxu0
    %v148 = vadd.f32 %v45, %v147
    %v149 = vpop.f32.mrb[0].mxu0
    %150 = vmatprep.mubr.f32.mxu0 0.0
    %151 = vmatmul.mubr.f32.gmra.mrb[0].mxu0 %v55
    %v152 = vpop.f32.mrb[0].mxu0
    %v153 = vadd.f32 %v45, %v152
    %v154 = vpop.f32.mrb[0].mxu0
    %155 = vmatprep.mubr.f32.mxu0 0.0
    %156 = vmatmul.mubr.f32.gmra.mrb[0].mxu0 %v58
    %v157 = vpop.f32.mrb[0].mxu0
    %v158 = vadd.f32 %v45, %v157
    %v159 = vpop.f32.mrb[0].mxu0
    %160 = vmatprep.mubr.f32.mxu0 0.0
    %161 = vmatmul.mubr.f32.gmra.mrb[0].mxu0 %v61
    %v162 = vpop.f32.mrb[0].mxu0
    %v163 = vadd.f32 %v45, %v162
    %v164 = vpop.f32.mrb[0].mxu0
    %165 = vmatprep.mubr.f32.mxu0 0.0
    %166 = vmatmul.mubr.f32.gmra.mrb[0].mxu0 %v64
    %v167 = vpop.f32.mrb[0].mxu0
    %v168 = vadd.f32 %v45, %v167
    %v169 = vpop.f32.mrb[0].mxu0
    %170 = vmatprep.mubr.f32.mxu0 0.0
    %171 = vmatmul.mubr.f32.gmra.mrb[0].mxu0 %v67
    %v172 = vpop.f32.mrb[0].mxu0
    %v173 = vadd.f32 %v45, %v172
    %v174 = vpop.f32.mrb[0].mxu0
    %175 = vmatprep.mubr.f32.mxu0 0.0
    %176 = vmatmul.mubr.f32.gmra.mrb[0].mxu0 %v70
    %v177 = vpop.f32.mrb[0].mxu0
    %v178 = vadd.f32 %v45, %v177
    %v179 = vpop.f32.mrb[0].mxu0
    %180 = vdwg.mxu0
    %vm181 = vcmask 261120
    %182 = vst.msk [vmem:[#allocation2] sm:$0xff] %vm181, %v143
    %183 = vst.msk [vmem:[#allocation2 + $0x8] sm:$0xff] %vm181, %v148
    %184 = vst.msk [vmem:[#allocation2 + $0x10] sm:$0xff] %vm181, %v153
    %185 = vst.msk [vmem:[#allocation2 + $0x18] sm:$0xff] %vm181, %v158
    %186 = vst.msk [vmem:[#allocation2 + $0x20] sm:$0xff] %vm181, %v163
    %187 = vst.msk [vmem:[#allocation2 + $0x28] sm:$0xff] %vm181, %v168
    %188 = vst.msk [vmem:[#allocation2 + $0x30] sm:$0xff] %vm181, %v173
    %189 = vst.msk [vmem:[#allocation2 + $0x38] sm:$0xff] %vm181, %v178
    %v190 = vld [vmem:[#allocation2] sm:$0xff]
    %v192 = vsel %vm181, 0, 0
    %194 = vmatprep.subr.bf16.mxu0 0
    %195 = vmatpush1.bf16.msra.mxu0 %v31
    %196 = vmatprep.subr.bf16.mxu0 0
    %197 = vmatpush1.bf16.msra.mxu0 %v32
    %198 = vmatprep.subr.bf16.mxu0 0
    %199 = vmatpush1.bf16.msra.mxu0 0
    %200 = vmatprep.subr.bf16.mxu0 0
    %201 = vmatpush1.bf16.msra.mxu0 0
    %202 = vmatprep.subr.bf16.mxu0 0
    %203 = vmatpush1.bf16.msra.mxu0 0
    %204 = vmatprep.subr.bf16.mxu0 0
    %205 = vmatpush1.bf16.msra.mxu0 0
    %206 = vmatprep.subr.bf16.mxu0 0
    %207 = vmatpush1.bf16.msra.mxu0 0
    %208 = vmatprep.subr.bf16.mxu0 0
    %209 = vmatpush1.bf16.msra.mxu0 0
    %210 = vmatprep.subr.bf16.mxu0 0
    %211 = vmatpush1.bf16.msra.mxu0 0
    %212 = vmatprep.subr.bf16.mxu0 0
    %213 = vmatpush1.bf16.msra.mxu0 0
    %214 = vmatprep.subr.bf16.mxu0 0
    %215 = vmatpush1.bf16.msra.mxu0 0
    %216 = vmatprep.subr.bf16.mxu0 0
    %217 = vmatpush1.bf16.msra.mxu0 0
    %218 = vmatprep.subr.bf16.mxu0 0
    %219 = vmatpush1.bf16.msra.mxu0 0
    %220 = vmatprep.subr.bf16.mxu0 0
    %221 = vmatpush1.bf16.msra.mxu0 0
    %222 = vmatprep.subr.bf16.mxu0 0
    %223 = vmatpush1.bf16.msra.mxu0 0
    %224 = vmatprep.subr.bf16.mxu0 0
    %225 = vmatpush1.bf16.msra.mxu0 0
    %226 = vmatprep.mubr.bf16.mxu0 0
    %227 = vmatmul.mubr.bf16.gmra.mrb[0].mxu0 %v192
    %v228 = vpop.f32.mrb[0].mxu0
    %v229 = vadd.f32 %v190, %v228
    %v230 = vpop.f32.mrb[0].mxu0
    %v231 = vpop.f32.mrb[0].mxu0
    %v232 = vpop.f32.mrb[0].mxu0
    %233 = vdwg.mxu0
    %v234 = vtanh.pop %v229
    %v235 = vld [vmem:[#allocation2 + $0x8] sm:$0xff]
    %v236 = vpack.c.bf16 %v234, %v234
    %v238 = vsel %vm181, %v236, 0
    %240 = vmatprep.subr.bf16.mxu0 0
    %241 = vmatpush1.bf16.msra.mxu0 %v31
    %242 = vmatprep.subr.bf16.mxu0 0
    %243 = vmatpush1.bf16.msra.mxu0 %v32
    %244 = vmatprep.subr.bf16.mxu0 0
    %245 = vmatpush1.bf16.msra.mxu0 0
    %246 = vmatprep.subr.bf16.mxu0 0
    %247 = vmatpush1.bf16.msra.mxu0 0
    %248 = vmatprep.subr.bf16.mxu0 0
    %249 = vmatpush1.bf16.msra.mxu0 0
    %250 = vmatprep.subr.bf16.mxu0 0
    %251 = vmatpush1.bf16.msra.mxu0 0
    %252 = vmatprep.subr.bf16.mxu0 0
    %253 = vmatpush1.bf16.msra.mxu0 0
    %254 = vmatprep.subr.bf16.mxu0 0
    %255 = vmatpush1.bf16.msra.mxu0 0
    %256 = vmatprep.subr.bf16.mxu0 0
    %257 = vmatpush1.bf16.msra.mxu0 0
    %258 = vmatprep.subr.bf16.mxu0 0
    %259 = vmatpush1.bf16.msra.mxu0 0
    %260 = vmatprep.subr.bf16.mxu0 0
    %261 = vmatpush1.bf16.msra.mxu0 0
    %262 = vmatprep.subr.bf16.mxu0 0
    %263 = vmatpush1.bf16.msra.mxu0 0
    %264 = vmatprep.subr.bf16.mxu0 0
    %265 = vmatpush1.bf16.msra.mxu0 0
    %266 = vmatprep.subr.bf16.mxu0 0
    %267 = vmatpush1.bf16.msra.mxu0 0
    %268 = vmatprep.subr.bf16.mxu0 0
    %269 = vmatpush1.bf16.msra.mxu0 0
    %270 = vmatprep.subr.bf16.mxu0 0
    %271 = vmatpush1.bf16.msra.mxu0 0
    %272 = vmatprep.mubr.bf16.mxu0 0
    %273 = vmatmul.mubr.bf16.gmra.mrb[0].mxu0 %v238
    %v274 = vpop.f32.mrb[0].mxu0
    %v275 = vadd.f32 %v235, %v274
    %v276 = vpop.f32.mrb[0].mxu0
    %v277 = vpop.f32.mrb[0].mxu0
    %v278 = vpop.f32.mrb[0].mxu0
    %279 = vdwg.mxu0
    %v280 = vtanh.pop %v275
    %v281 = vld [vmem:[#allocation2 + $0x10] sm:$0xff]
    %v282 = vpack.c.bf16 %v280, %v280
    %v284 = vsel %vm181, %v282, 0
    %286 = vmatprep.subr.bf16.mxu0 0
    %287 = vmatpush1.bf16.msra.mxu0 %v31
    %288 = vmatprep.subr.bf16.mxu0 0
    %289 = vmatpush1.bf16.msra.mxu0 %v32
    %290 = vmatprep.subr.bf16.mxu0 0
    %291 = vmatpush1.bf16.msra.mxu0 0
    %292 = vmatprep.subr.bf16.mxu0 0
    %293 = vmatpush1.bf16.msra.mxu0 0
    %294 = vmatprep.subr.bf16.mxu0 0
    %295 = vmatpush1.bf16.msra.mxu0 0
    %296 = vmatprep.subr.bf16.mxu0 0
    %297 = vmatpush1.bf16.msra.mxu0 0
    %298 = vmatprep.subr.bf16.mxu0 0
    %299 = vmatpush1.bf16.msra.mxu0 0
    %300 = vmatprep.subr.bf16.mxu0 0
    %301 = vmatpush1.bf16.msra.mxu0 0
    %302 = vmatprep.subr.bf16.mxu0 0
    %303 = vmatpush1.bf16.msra.mxu0 0
    %304 = vmatprep.subr.bf16.mxu0 0
    %305 = vmatpush1.bf16.msra.mxu0 0
    %306 = vmatprep.subr.bf16.mxu0 0
    %307 = vmatpush1.bf16.msra.mxu0 0
    %308 = vmatprep.subr.bf16.mxu0 0
    %309 = vmatpush1.bf16.msra.mxu0 0
    %310 = vmatprep.subr.bf16.mxu0 0
    %311 = vmatpush1.bf16.msra.mxu0 0
    %312 = vmatprep.subr.bf16.mxu0 0
    %313 = vmatpush1.bf16.msra.mxu0 0
    %314 = vmatprep.subr.bf16.mxu0 0
    %315 = vmatpush1.bf16.msra.mxu0 0
    %316 = vmatprep.subr.bf16.mxu0 0
    %317 = vmatpush1.bf16.msra.mxu0 0
    %318 = vmatprep.mubr.bf16.mxu0 0
    %319 = vmatmul.mubr.bf16.gmra.mrb[0].mxu0 %v284
    %v320 = vpop.f32.mrb[0].mxu0
    %v321 = vadd.f32 %v281, %v320
    %v322 = vpop.f32.mrb[0].mxu0
    %v323 = vpop.f32.mrb[0].mxu0
    %v324 = vpop.f32.mrb[0].mxu0
    %325 = vdwg.mxu0
    %v326 = vtanh.pop %v321
    %v327 = vld [vmem:[#allocation2 + $0x18] sm:$0xff]
    %v328 = vpack.c.bf16 %v326, %v326
    %v330 = vsel %vm181, %v328, 0
    %332 = vmatprep.subr.bf16.mxu0 0
    %333 = vmatpush1.bf16.msra.mxu0 %v31
    %334 = vmatprep.subr.bf16.mxu0 0
    %335 = vmatpush1.bf16.msra.mxu0 %v32
    %336 = vmatprep.subr.bf16.mxu0 0
    %337 = vmatpush1.bf16.msra.mxu0 0
    %338 = vmatprep.subr.bf16.mxu0 0
    %339 = vmatpush1.bf16.msra.mxu0 0
    %340 = vmatprep.subr.bf16.mxu0 0
    %341 = vmatpush1.bf16.msra.mxu0 0
    %342 = vmatprep.subr.bf16.mxu0 0
    %343 = vmatpush1.bf16.msra.mxu0 0
    %344 = vmatprep.subr.bf16.mxu0 0
    %345 = vmatpush1.bf16.msra.mxu0 0
    %346 = vmatprep.subr.bf16.mxu0 0
    %347 = vmatpush1.bf16.msra.mxu0 0
    %348 = vmatprep.subr.bf16.mxu0 0
    %349 = vmatpush1.bf16.msra.mxu0 0
    %350 = vmatprep.subr.bf16.mxu0 0
    %351 = vmatpush1.bf16.msra.mxu0 0
    %352 = vmatprep.subr.bf16.mxu0 0
    %353 = vmatpush1.bf16.msra.mxu0 0
    %354 = vmatprep.subr.bf16.mxu0 0
    %355 = vmatpush1.bf16.msra.mxu0 0
    %356 = vmatprep.subr.bf16.mxu0 0
    %357 = vmatpush1.bf16.msra.mxu0 0
    %358 = vmatprep.subr.bf16.mxu0 0
    %359 = vmatpush1.bf16.msra.mxu0 0
    %360 = vmatprep.subr.bf16.mxu0 0
    %361 = vmatpush1.bf16.msra.mxu0 0
    %362 = vmatprep.subr.bf16.mxu0 0
    %363 = vmatpush1.bf16.msra.mxu0 0
    %364 = vmatprep.mubr.bf16.mxu0 0
    %365 = vmatmul.mubr.bf16.gmra.mrb[0].mxu0 %v330
    %v366 = vpop.f32.mrb[0].mxu0
    %v367 = vadd.f32 %v327, %v366
    %v368 = vpop.f32.mrb[0].mxu0
    %v369 = vpop.f32.mrb[0].mxu0
    %v370 = vpop.f32.mrb[0].mxu0
    %371 = vdwg.mxu0
    %v372 = vtanh.pop %v367
    %v373 = vld [vmem:[#allocation2 + $0x20] sm:$0xff]
    %v374 = vpack.c.bf16 %v372, %v372
    %v376 = vsel %vm181, %v374, 0
    %378 = vmatprep.subr.bf16.mxu0 0
    %379 = vmatpush1.bf16.msra.mxu0 %v31
    %380 = vmatprep.subr.bf16.mxu0 0
    %381 = vmatpush1.bf16.msra.mxu0 %v32
    %382 = vmatprep.subr.bf16.mxu0 0
    %383 = vmatpush1.bf16.msra.mxu0 0
    %384 = vmatprep.subr.bf16.mxu0 0
    %385 = vmatpush1.bf16.msra.mxu0 0
    %386 = vmatprep.subr.bf16.mxu0 0
    %387 = vmatpush1.bf16.msra.mxu0 0
    %388 = vmatprep.subr.bf16.mxu0 0
    %389 = vmatpush1.bf16.msra.mxu0 0
    %390 = vmatprep.subr.bf16.mxu0 0
    %391 = vmatpush1.bf16.msra.mxu0 0
    %392 = vmatprep.subr.bf16.mxu0 0
    %393 = vmatpush1.bf16.msra.mxu0 0
    %394 = vmatprep.subr.bf16.mxu0 0
    %395 = vmatpush1.bf16.msra.mxu0 0
    %396 = vmatprep.subr.bf16.mxu0 0
    %397 = vmatpush1.bf16.msra.mxu0 0
    %398 = vmatprep.subr.bf16.mxu0 0
    %399 = vmatpush1.bf16.msra.mxu0 0
    %400 = vmatprep.subr.bf16.mxu0 0
    %401 = vmatpush1.bf16.msra.mxu0 0
    %402 = vmatprep.subr.bf16.mxu0 0
    %403 = vmatpush1.bf16.msra.mxu0 0
    %404 = vmatprep.subr.bf16.mxu0 0
    %405 = vmatpush1.bf16.msra.mxu0 0
    %406 = vmatprep.subr.bf16.mxu0 0
    %407 = vmatpush1.bf16.msra.mxu0 0
    %408 = vmatprep.subr.bf16.mxu0 0
    %409 = vmatpush1.bf16.msra.mxu0 0
    %410 = vmatprep.mubr.bf16.mxu0 0
    %411 = vmatmul.mubr.bf16.gmra.mrb[0].mxu0 %v376
    %v412 = vpop.f32.mrb[0].mxu0
    %v413 = vadd.f32 %v373, %v412
    %v414 = vpop.f32.mrb[0].mxu0
    %v415 = vpop.f32.mrb[0].mxu0
    %v416 = vpop.f32.mrb[0].mxu0
    %417 = vdwg.mxu0
    %v418 = vtanh.pop %v413
    %v419 = vld [vmem:[#allocation2 + $0x28] sm:$0xff]
    %v420 = vpack.c.bf16 %v418, %v418
    %v422 = vsel %vm181, %v420, 0
    %424 = vmatprep.subr.bf16.mxu0 0
    %425 = vmatpush1.bf16.msra.mxu0 %v31
    %426 = vmatprep.subr.bf16.mxu0 0
    %427 = vmatpush1.bf16.msra.mxu0 %v32
    %428 = vmatprep.subr.bf16.mxu0 0
    %429 = vmatpush1.bf16.msra.mxu0 0
    %430 = vmatprep.subr.bf16.mxu0 0
    %431 = vmatpush1.bf16.msra.mxu0 0
    %432 = vmatprep.subr.bf16.mxu0 0
    %433 = vmatpush1.bf16.msra.mxu0 0
    %434 = vmatprep.subr.bf16.mxu0 0
    %435 = vmatpush1.bf16.msra.mxu0 0
    %436 = vmatprep.subr.bf16.mxu0 0
    %437 = vmatpush1.bf16.msra.mxu0 0
    %438 = vmatprep.subr.bf16.mxu0 0
    %439 = vmatpush1.bf16.msra.mxu0 0
    %440 = vmatprep.subr.bf16.mxu0 0
    %441 = vmatpush1.bf16.msra.mxu0 0
    %442 = vmatprep.subr.bf16.mxu0 0
    %443 = vmatpush1.bf16.msra.mxu0 0
    %444 = vmatprep.subr.bf16.mxu0 0
    %445 = vmatpush1.bf16.msra.mxu0 0
    %446 = vmatprep.subr.bf16.mxu0 0
    %447 = vmatpush1.bf16.msra.mxu0 0
    %448 = vmatprep.subr.bf16.mxu0 0
    %449 = vmatpush1.bf16.msra.mxu0 0
    %450 = vmatprep.subr.bf16.mxu0 0
    %451 = vmatpush1.bf16.msra.mxu0 0
    %452 = vmatprep.subr.bf16.mxu0 0
    %453 = vmatpush1.bf16.msra.mxu0 0
    %454 = vmatprep.subr.bf16.mxu0 0
    %455 = vmatpush1.bf16.msra.mxu0 0
    %456 = vmatprep.mubr.bf16.mxu0 0
    %457 = vmatmul.mubr.bf16.gmra.mrb[0].mxu0 %v422
    %v458 = vpop.f32.mrb[0].mxu0
    %v459 = vadd.f32 %v419, %v458
    %v460 = vpop.f32.mrb[0].mxu0
    %v461 = vpop.f32.mrb[0].mxu0
    %v462 = vpop.f32.mrb[0].mxu0
    %463 = vdwg.mxu0
    %v464 = vtanh.pop %v459
    %v465 = vld [vmem:[#allocation2 + $0x30] sm:$0xff]
    %v466 = vpack.c.bf16 %v464, %v464
    %v468 = vsel %vm181, %v466, 0
    %470 = vmatprep.subr.bf16.mxu0 0
    %471 = vmatpush1.bf16.msra.mxu0 %v31
    %472 = vmatprep.subr.bf16.mxu0 0
    %473 = vmatpush1.bf16.msra.mxu0 %v32
    %474 = vmatprep.subr.bf16.mxu0 0
    %475 = vmatpush1.bf16.msra.mxu0 0
    %476 = vmatprep.subr.bf16.mxu0 0
    %477 = vmatpush1.bf16.msra.mxu0 0
    %478 = vmatprep.subr.bf16.mxu0 0
    %479 = vmatpush1.bf16.msra.mxu0 0
    %480 = vmatprep.subr.bf16.mxu0 0
    %481 = vmatpush1.bf16.msra.mxu0 0
    %482 = vmatprep.subr.bf16.mxu0 0
    %483 = vmatpush1.bf16.msra.mxu0 0
    %484 = vmatprep.subr.bf16.mxu0 0
    %485 = vmatpush1.bf16.msra.mxu0 0
    %486 = vmatprep.subr.bf16.mxu0 0
    %487 = vmatpush1.bf16.msra.mxu0 0
    %488 = vmatprep.subr.bf16.mxu0 0
    %489 = vmatpush1.bf16.msra.mxu0 0
    %490 = vmatprep.subr.bf16.mxu0 0
    %491 = vmatpush1.bf16.msra.mxu0 0
    %492 = vmatprep.subr.bf16.mxu0 0
    %493 = vmatpush1.bf16.msra.mxu0 0
    %494 = vmatprep.subr.bf16.mxu0 0
    %495 = vmatpush1.bf16.msra.mxu0 0
    %496 = vmatprep.subr.bf16.mxu0 0
    %497 = vmatpush1.bf16.msra.mxu0 0
    %498 = vmatprep.subr.bf16.mxu0 0
    %499 = vmatpush1.bf16.msra.mxu0 0
    %500 = vmatprep.subr.bf16.mxu0 0
    %501 = vmatpush1.bf16.msra.mxu0 0
    %502 = vmatprep.mubr.bf16.mxu0 0
    %503 = vmatmul.mubr.bf16.gmra.mrb[0].mxu0 %v468
    %v504 = vpop.f32.mrb[0].mxu0
    %v505 = vadd.f32 %v465, %v504
    %v506 = vpop.f32.mrb[0].mxu0
    %v507 = vpop.f32.mrb[0].mxu0
    %v508 = vpop.f32.mrb[0].mxu0
    %509 = vdwg.mxu0
    %v510 = vtanh.pop %v505
    %v511 = vld [vmem:[#allocation2 + $0x38] sm:$0xff]
    %v512 = vpack.c.bf16 %v510, %v510
    %v514 = vsel %vm181, %v512, 0
    %516 = vmatprep.subr.bf16.mxu0 0
    %517 = vmatpush1.bf16.msra.mxu0 %v31
    %518 = vmatprep.subr.bf16.mxu0 0
    %519 = vmatpush1.bf16.msra.mxu0 %v32
    %520 = vmatprep.subr.bf16.mxu0 0
    %521 = vmatpush1.bf16.msra.mxu0 0
    %522 = vmatprep.subr.bf16.mxu0 0
    %523 = vmatpush1.bf16.msra.mxu0 0
    %524 = vmatprep.subr.bf16.mxu0 0
    %525 = vmatpush1.bf16.msra.mxu0 0
    %526 = vmatprep.subr.bf16.mxu0 0
    %527 = vmatpush1.bf16.msra.mxu0 0
    %528 = vmatprep.subr.bf16.mxu0 0
    %529 = vmatpush1.bf16.msra.mxu0 0
    %530 = vmatprep.subr.bf16.mxu0 0
    %531 = vmatpush1.bf16.msra.mxu0 0
    %532 = vmatprep.subr.bf16.mxu0 0
    %533 = vmatpush1.bf16.msra.mxu0 0
    %534 = vmatprep.subr.bf16.mxu0 0
    %535 = vmatpush1.bf16.msra.mxu0 0
    %536 = vmatprep.subr.bf16.mxu0 0
    %537 = vmatpush1.bf16.msra.mxu0 0
    %538 = vmatprep.subr.bf16.mxu0 0
    %539 = vmatpush1.bf16.msra.mxu0 0
    %540 = vmatprep.subr.bf16.mxu0 0
    %541 = vmatpush1.bf16.msra.mxu0 0
    %542 = vmatprep.subr.bf16.mxu0 0
    %543 = vmatpush1.bf16.msra.mxu0 0
    %544 = vmatprep.subr.bf16.mxu0 0
    %545 = vmatpush1.bf16.msra.mxu0 0
    %546 = vmatprep.subr.bf16.mxu0 0
    %547 = vmatpush1.bf16.msra.mxu0 0
    %548 = vmatprep.mubr.bf16.mxu0 0
    %549 = vmatmul.mubr.bf16.gmra.mrb[0].mxu0 %v514
    %v550 = vpop.f32.mrb[0].mxu0
    %v551 = vadd.f32 %v511, %v550
    %v552 = vpop.f32.mrb[0].mxu0
    %v553 = vpop.f32.mrb[0].mxu0
    %v554 = vpop.f32.mrb[0].mxu0
    %555 = vdwg.mxu0
    %v556 = vtanh.pop %v551
    %v557 = vld [vmem:[%s4] sm:$0xff]
    %v558 = vld [vmem:[%s4 + $0x8] sm:$0xff]
    %v559 = vld [vmem:[%s4 + $0x10] sm:$0xff]
    %v560 = vld [vmem:[%s4 + $0x18] sm:$0xff]
    %v561 = vld [vmem:[%s5] sm:$0x1]
    %v563 = vlaneseq
    %v564 = vshrl.u32 %v563, 7
    %v565 = vsub.s32 0, %v564
    %v566 = vrot.slane %v561, %v565
    %v569 = vsel %vm181, %v556, 0
    %571 = vmatprep.subr.mxu0 0.0
    %572 = vmatpush1.msra.mxu0 %v557
    %573 = vmatprep.subr.mxu0 0.0
    %574 = vmatpush1.msra.mxu0 %v558
    %575 = vmatprep.subr.mxu0 0.0
    %576 = vmatpush1.msra.mxu0 %v559
    %577 = vmatprep.subr.mxu0 0.0
    %578 = vmatpush1.msra.mxu0 %v560
    %579 = vmatprep.subr.mxu0 0.0
    %580 = vmatpush1.msra.mxu0 0.0
    %581 = vmatprep.subr.mxu0 0.0
    %582 = vmatpush1.msra.mxu0 0.0
    %583 = vmatprep.subr.mxu0 0.0
    %584 = vmatpush1.msra.mxu0 0.0
    %585 = vmatprep.subr.mxu0 0.0
    %586 = vmatpush1.msra.mxu0 0.0
    %587 = vmatprep.subr.mxu0 0.0
    %588 = vmatpush1.msra.mxu0 0.0
    %589 = vmatprep.subr.mxu0 0.0
    %590 = vmatpush1.msra.mxu0 0.0
    %591 = vmatprep.subr.mxu0 0.0
    %592 = vmatpush1.msra.mxu0 0.0
    %593 = vmatprep.subr.mxu0 0.0
    %594 = vmatpush1.msra.mxu0 0.0
    %595 = vmatprep.subr.mxu0 0.0
    %596 = vmatpush1.msra.mxu0 0.0
    %597 = vmatprep.subr.mxu0 0.0
    %598 = vmatpush1.msra.mxu0 0.0
    %599 = vmatprep.subr.mxu0 0.0
    %600 = vmatpush1.msra.mxu0 0.0
    %601 = vmatprep.subr.mxu0 0.0
    %602 = vmatpush1.msra.mxu0 0.0
    %603 = vmatprep.subr.mxu0 0.0
    %604 = vmatpush1.msra.mxu0 0.0
    %605 = vmatprep.subr.mxu0 0.0
    %606 = vmatpush1.msra.mxu0 0.0
    %607 = vmatprep.subr.mxu0 0.0
    %608 = vmatpush1.msra.mxu0 0.0
    %609 = vmatprep.subr.mxu0 0.0
    %610 = vmatpush1.msra.mxu0 0.0
    %611 = vmatprep.subr.mxu0 0.0
    %612 = vmatpush1.msra.mxu0 0.0
    %613 = vmatprep.subr.mxu0 0.0
    %614 = vmatpush1.msra.mxu0 0.0
    %615 = vmatprep.subr.mxu0 0.0
    %616 = vmatpush1.msra.mxu0 0.0
    %617 = vmatprep.subr.mxu0 0.0
    %618 = vmatpush1.msra.mxu0 0.0
    %619 = vmatprep.subr.mxu0 0.0
    %620 = vmatpush1.msra.mxu0 0.0
    %621 = vmatprep.subr.mxu0 0.0
    %622 = vmatpush1.msra.mxu0 0.0
    %623 = vmatprep.subr.mxu0 0.0
    %624 = vmatpush1.msra.mxu0 0.0
    %625 = vmatprep.subr.mxu0 0.0
    %626 = vmatpush1.msra.mxu0 0.0
    %627 = vmatprep.subr.mxu0 0.0
    %628 = vmatpush1.msra.mxu0 0.0
    %629 = vmatprep.subr.mxu0 0.0
    %630 = vmatpush1.msra.mxu0 0.0
    %631 = vmatprep.subr.mxu0 0.0
    %632 = vmatpush1.msra.mxu0 0.0
    %633 = vmatprep.subr.mxu0 0.0
    %634 = vmatpush1.msra.mxu0 0.0
    %635 = vmatprep.mubr.f32.mxu0 0.0
    %636 = vmatmul.mubr.f32.gmra.mrb[0].mxu0 %v569
    %v637 = vpop.f32.mrb[0].mxu0
    %v638 = vadd.f32 %v566, %v637
    %v639 = vpop.f32.mrb[0].mxu0
    %640 = vdwg.mxu0
    %vm641 = vcmask 130048
    %642 = vst.msk [vmem:[#allocation3] sm:$0xff] %vm641, %v638
    // Predicated region
    $region26: #{tpu_custom_call.1} parent=1 // pred_check
      _
    $region27: #{tpu_custom_call.1} parent=1 // pred_check_branch
      %644 = sbr.rel (0) target = $region29
    $region28: #{tpu_custom_call.1} parent=1 // pred_region
      %s646 = ssub.s32 128, 128
      %647 = vsyncadd [#allocation4], %s646
      %s649 = sshll.u32 [#allocation3], 4
      %s650 = int_to_ptr.vmem [resolvable:$true] %s649
      %652 = dma.vmem_to_hbm [thread:$0]  %s650, 128, %s6, [#allocation4]
    $region29: #{tpu_custom_call.1} parent=1 // pred_fallthru
      _
    // Predicated region
    $region30: #{tpu_custom_call.1} parent=1 // pred_check
      _
    $region31: #{tpu_custom_call.1} parent=1 // pred_check_branch
      %654 = sbr.rel (0) target = $region33
    $region32: #{tpu_custom_call.1} parent=1 // pred_region
      %655 = dma.done [#allocation4], 128
    $region33: #{tpu_custom_call.1} parent=1 // pred_fallthru
      _
    %656 = vsyncpa [#allocation4], 1

</llo_original>
